<compile_context>
chip_gen: v6e
topology: v6e:2x2x1
jax: 0.10.0
libtpu: 0.0.40
codegen_flags: <defaults>
</compile_context>

<pallas_src>
import math

import jax
import jax.numpy as jnp
from jax.experimental import pallas as pl
from jax.experimental.pallas import tpu as pltpu

EPS = 1e-5


def _round_up(v, m):
    return (v + m - 1) // m * m


def _ln(xf, gamma, beta):
    # torch.nn.LayerNorm semantics: biased variance, eps inside rsqrt, f32 stats.
    mean = jnp.mean(xf, axis=-1, keepdims=True)
    xc = xf - mean
    var = jnp.mean(xc * xc, axis=-1, keepdims=True)
    inv = jax.lax.rsqrt(var + EPS)
    return xc * (inv * gamma) + beta


# ----------------------------------------------------------------------------
# Kernels
# ----------------------------------------------------------------------------
def _prenorm_tokens_outer_kernel(x_ref, gamma_ref, beta_ref, w_ref, bias_ref,
                                 o_ref, y_ref):
    # grid = (token tiles, H tiles), j = program_id(1) innermost.
    # LayerNorm runs once per token tile (j == 0); the normalized activation
    # (already cast to the MXU dtype) is cached in y_ref for all H tiles.
    @pl.when(pl.program_id(1) == 0)
    def _():
        xf = x_ref[...].astype(jnp.float32)
        g = gamma_ref[...].astype(jnp.float32)
        bt = beta_ref[...].astype(jnp.float32)
        y_ref[...] = _ln(xf, g, bt).astype(y_ref.dtype)

    out = jnp.dot(y_ref[...], w_ref[...], preferred_element_type=jnp.float32)
    out = out + bias_ref[...].astype(jnp.float32)
    o_ref[...] = out.astype(o_ref.dtype)


def _prenorm_h_outer_kernel(x_ref, gamma_ref, beta_ref, w_ref, bias_ref, o_ref):
    # grid = (H tiles, token tiles): the W tile is resident across the inner
    # token axis (fetched exactly once total); x is the re-streamed operand.
    xf = x_ref[...].astype(jnp.float32)
    g = gamma_ref[...].astype(jnp.float32)
    bt = beta_ref[...].astype(jnp.float32)
    y = _ln(xf, g, bt).astype(w_ref.dtype)
    out = jnp.dot(y, w_ref[...], preferred_element_type=jnp.float32)
    out = out + bias_ref[...].astype(jnp.float32)
    o_ref[...] = out.astype(o_ref.dtype)


# ----------------------------------------------------------------------------
# Sizing helpers
# ----------------------------------------------------------------------------
def _vmem_budget_bytes():
    cap = 64 << 20  # conservative default: v7x per-TC VMEM
    try:
        info = pltpu.get_tpu_info()
        cap = int(getattr(info, "vmem_capacity_bytes", cap)) or cap
    except Exception:
        pass
    return cap * 3 // 4  # leave headroom for compiler-internal scratch


def _footprint_bytes(tn, th, d, x_isz, o_isz, comp_isz, ln_cache):
    buf = 2 * tn * d * x_isz           # double-buffered x tile
    buf += 2 * d * th * comp_isz       # double-buffered W tile (worst case)
    buf += 2 * tn * th * o_isz         # double-buffered out tile
    buf += 2 * th * 4 + 4 * d * 4      # bias tile + gamma/beta
    if ln_cache:
        buf += tn * d * comp_isz       # normalized-activation scratch
    buf += 3 * tn * d * 4 + tn * th * 4  # f32 working set (LN temps + acc)
    return buf


# ----------------------------------------------------------------------------
# Wrapper
# ----------------------------------------------------------------------------
def prenorm_linear(x, gamma, beta, w, b, *, mxu_dtype=None, tn=None, th=None,
                   grid_order="auto", vmem_budget=None):
    """PreNorm(dim, fn=Linear(dim->hidden)): x [..., D] -> [..., H]."""
    *lead, D = x.shape
    H = w.shape[1]
    N = math.prod(lead) if lead else 1

    x_isz = jnp.dtype(x.dtype).itemsize
    o_isz = x_isz
    comp_dtype = jnp.dtype(mxu_dtype) if mxu_dtype is not None else jnp.dtype(w.dtype)
    comp_isz = comp_dtype.itemsize

    budget = int(vmem_budget) if vmem_budget is not None else _vmem_budget_bytes()
    H_128 = _round_up(H, 128)

    # --- token tile: sublane aligned; bound the f32 LN working set for big D ---
    tn_target = tn if tn is not None else (256 if D >= 2048 else 512)
    tn_ = max(16, _round_up(min(tn_target, N), 16))

    # --- hidden tile: prefer whole-W residency, else largest tile that fits ---
    if th is not None:
        th_ = min(_round_up(th, 128), H_128)
    else:
        cand_tn = [tn_] if tn is not None else (
            [tn_] + [t for t in (256, 128, 64, 32, 16) if t < tn_])
        picked = None
        # Phase 1: whole W resident -> zero redundant HBM traffic, LN once/tile.
        for tn_try in cand_tn:
            if _footprint_bytes(tn_try, H_128, D, x_isz, o_isz, comp_isz, True) <= budget:
                picked = (tn_try, H_128)
                break
        # Phase 2: tile the hidden dim; grid order is chosen adaptively below.
        if picked is None:
            cand_th = [t for t in (4096, 2048, 1024, 512, 256, 128) if t < H_128]
            for tn_try in cand_tn:
                for th_try in cand_th:
                    if _footprint_bytes(tn_try, th_try, D, x_isz, o_isz,
                                        comp_isz, True) <= budget:
                        picked = (tn_try, th_try)
                        break
                if picked is not None:
                    break
        if picked is None:
            picked = (16, 128)  # pathological D; smallest legal tiles
        tn_, th_ = picked

    H_pad = _round_up(H_128, th_)
    N_pad = _round_up(N, tn_)
    n_i = N_pad // tn_
    n_j = H_pad // th_

    # --- grid ordering: re-fetch whichever operand costs less to re-stream ---
    if grid_order == "auto":
        if n_j == 1:
            order = "tokens_outer"
        else:
            redundant_w = (n_i - 1) * D * H_pad * comp_isz   # tokens-outer cost
            redundant_x = (n_j - 1) * N_pad * D * x_isz      # h-outer cost
            order = "tokens_outer" if redundant_w <= redundant_x else "h_outer"
    else:
        order = grid_order

    # --- pad operands (zero rows/cols are inert; sliced off afterwards) ---
    x2 = x.reshape(N, D)
    if N_pad != N:
        x2 = jnp.pad(x2, ((0, N_pad - N), (0, 0)))
    w2 = w.astype(comp_dtype)
    if H_pad != H:
        w2 = jnp.pad(w2, ((0, 0), (0, H_pad - H)))
    b2 = b.astype(jnp.float32)
    if H_pad != H:
        b2 = jnp.pad(b2, ((0, H_pad - H),))
    b2 = b2.reshape(1, H_pad)
    gamma2 = gamma.reshape(1, D)
    beta2 = beta.reshape(1, D)

    # --- cost estimate reflecting actual re-stream counts ---
    if order == "tokens_outer":
        w_stream, x_stream, trans = n_i, 1, N_pad
    else:
        w_stream, x_stream, trans = 1, n_j, N_pad * n_j
    cost = pl.CostEstimate(
        flops=2 * N_pad * D * H_pad,
        transcendentals=trans,
        bytes_accessed=(x_stream * N_pad * D * x_isz
                        + w_stream * D * H_pad * comp_isz
                        + N_pad * H_pad * o_isz
                        + H_pad * 4 + 2 * D * 4),
    )

    est = _footprint_bytes(tn_, th_, D, x_isz, o_isz, comp_isz,
                           order == "tokens_outer")
    vmem_limit = int(min(_vmem_budget_bytes(), max(32 << 20, 2 * est)))

    if order == "tokens_outer":
        grid = (n_i, n_j)
        in_specs = [
            pl.BlockSpec((tn_, D), lambda i, j: (i, 0)),   # x token tile
            pl.BlockSpec((1, D), lambda i, j: (0, 0)),     # gamma (resident)
            pl.BlockSpec((1, D), lambda i, j: (0, 0)),     # beta  (resident)
            pl.BlockSpec((D, th_), lambda i, j: (0, j)),   # W tile
            pl.BlockSpec((1, th_), lambda i, j: (0, j)),   # bias tile
        ]
        out_specs = pl.BlockSpec((tn_, th_), lambda i, j: (i, j))
        scratch = [pltpu.VMEM((tn_, D), comp_dtype)]       # LN cache
        kernel = _prenorm_tokens_outer_kernel
        # j carries the cached normalized activation -> must stay on one core.
        dim_sem = ("parallel", "arbitrary")
    else:
        grid = (n_j, n_i)
        in_specs = [
            pl.BlockSpec((tn_, D), lambda j, i: (i, 0)),   # x (re-streamed)
            pl.BlockSpec((1, D), lambda j, i: (0, 0)),     # gamma
            pl.BlockSpec((1, D), lambda j, i: (0, 0)),     # beta
            pl.BlockSpec((D, th_), lambda j, i: (0, j)),   # W tile (resident over i)
            pl.BlockSpec((1, th_), lambda j, i: (0, j)),   # bias tile
        ]
        out_specs = pl.BlockSpec((tn_, th_), lambda j, i: (i, j))
        scratch = []
        kernel = _prenorm_h_outer_kernel
        dim_sem = ("parallel", "parallel")

    out = pl.pallas_call(
        kernel,
        out_shape=jax.ShapeDtypeStruct((N_pad, H_pad), x.dtype),
        grid_spec=pltpu.PrefetchScalarGridSpec(
            num_scalar_prefetch=0,
            grid=grid,
            in_specs=in_specs,
            out_specs=out_specs,
            scratch_shapes=scratch,
        ),
        compiler_params=pltpu.CompilerParams(
            dimension_semantics=dim_sem,
            vmem_limit_bytes=vmem_limit,
        ),
        cost_estimate=cost,
    )(x2, gamma2, beta2, w2, b2)

    return out[:N, :H].reshape(*lead, H)


def prenorm_linear_ref(x, gamma, beta, w, b):
    xf = x.astype(jnp.float32)
    mean = jnp.mean(xf, axis=-1, keepdims=True)
    var = jnp.mean((xf - mean) ** 2, axis=-1, keepdims=True)
    y = (xf - mean) * jax.lax.rsqrt(var + EPS) * gamma + beta
    return (y @ w.astype(jnp.float32) + b).astype(x.dtype)


if __name__ == "__main__":
    key = jax.random.PRNGKey(0)
    ks = jax.random.split(key, 10)

    # PreNorm(dim=32, fn=Linear(32, 64)) on x: [B=2, S=8, D=32]
    B, S, D, H = 2, 8, 32, 64
    x = jax.random.normal(ks[0], (B, S, D), dtype=jnp.float32)
    gamma = jnp.ones((D,), jnp.float32) + 0.01 * jax.random.normal(ks[1], (D,), jnp.float32)
    beta = 0.01 * jax.random.normal(ks[2], (D,), jnp.float32)
    w = jax.random.normal(ks[3], (D, H), dtype=jnp.float32) / jnp.sqrt(D)
    b = 0.01 * jax.random.normal(ks[4], (H,), dtype=jnp.float32)

    ref = prenorm_linear_ref(x, gamma, beta, w, b)

    # 1) Default path: whole W resident (single H tile), LN once per token tile.
    out = prenorm_linear(x, gamma, beta, w, b)
    jax.block_until_ready(out)
    assert out.shape == (B, S, H)
    assert jnp.allclose(out, ref, atol=1e-4, rtol=1e-4), "mismatch (resident W)"

    # 2) Exercise the H-tiled paths (both grid orderings) on a slightly larger toy.
    B2, S2, D2, H2 = 2, 64, 128, 384
    x2 = jax.random.normal(ks[5], (B2, S2, D2), dtype=jnp.float32)
    gamma2 = jnp.ones((D2,), jnp.float32) + 0.01 * jax.random.normal(ks[6], (D2,), jnp.float32)
    beta2 = 0.01 * jax.random.normal(ks[7], (D2,), jnp.float32)
    w2 = jax.random.normal(ks[8], (D2, H2), dtype=jnp.float32) / jnp.sqrt(D2)
    b2 = 0.01 * jax.random.normal(ks[9], (H2,), dtype=jnp.float32)
    ref2 = prenorm_linear_ref(x2, gamma2, beta2, w2, b2)

    out_to = prenorm_linear(x2, gamma2, beta2, w2, b2, th=128,
                            grid_order="tokens_outer")   # LN-cache scratch path
    jax.block_until_ready(out_to)
    assert jnp.allclose(out_to, ref2, atol=1e-4, rtol=1e-4), "mismatch (tokens outer)"

    out_ho = prenorm_linear(x2, gamma2, beta2, w2, b2, th=128,
                            grid_order="h_outer")        # W-resident-over-tokens path
    jax.block_until_ready(out_ho)
    assert jnp.allclose(out_ho, ref2, atol=1e-4, rtol=1e-4), "mismatch (H outer)"

    # 3) bf16 MXU feeding (opt-in; looser tolerance).
    out_bf16 = prenorm_linear(x, gamma, beta, w, b, mxu_dtype=jnp.bfloat16)
    jax.block_until_ready(out_bf16)
    assert jnp.allclose(out_bf16, ref, atol=5e-2, rtol=5e-2), "mismatch (bf16 MXU)"

    print("KERNEL_OK")
</pallas_src>

<mosaic_0001>
module attributes {stable_mosaic.version = 11 : i64} {
  func.func @_prenorm_tokens_outer_kernel(%arg0: i32, %arg1: i32, %arg2: memref<16x32xf32, #tpu.memory_space<vmem>>, %arg3: memref<1x32xf32, #tpu.memory_space<vmem>>, %arg4: memref<1x32xf32, #tpu.memory_space<vmem>>, %arg5: memref<32x128xf32, #tpu.memory_space<vmem>>, %arg6: memref<1x128xf32, #tpu.memory_space<vmem>>, %arg7: memref<16x128xf32, #tpu.memory_space<vmem>>, %arg8: memref<16x32xf32, #tpu.memory_space<vmem>>) attributes {dimension_semantics = [#tpu.dimension_semantics<parallel>, #tpu.dimension_semantics<arbitrary>], iteration_bounds = array<i64: 1, 1>, scalar_prefetch = 0 : i64, scratch_operands = 1 : i64, tpu.core_type = #tpu.core_type<tc>, window_params = [{transform_indices = @transform_0, window_bounds = array<i64: 16, 32>}, {pipeline_mode = #tpu.pipeline_mode<synchronous>, transform_indices = @transform_1, window_bounds = array<i64: 1, 32>}, {pipeline_mode = #tpu.pipeline_mode<synchronous>, transform_indices = @transform_2, window_bounds = array<i64: 1, 32>}, {transform_indices = @transform_3, window_bounds = array<i64: 32, 128>}, {transform_indices = @transform_4, window_bounds = array<i64: 1, 128>}, {transform_indices = @transform_5, window_bounds = array<i64: 16, 128>}]} {
    %c0_i32 = arith.constant 0 : i32
    %0 = arith.cmpi eq, %arg1, %c0_i32 : i32
    %1 = arith.extui %0 : i1 to i32
    %c0_i32_0 = arith.constant 0 : i32
    %2 = arith.cmpi ne, %1, %c0_i32_0 : i32
    scf.if %2 {
      %c0_8 = arith.constant 0 : index
      %c0_9 = arith.constant 0 : index
      %10 = vector.load %arg2[%c0_8, %c0_9] : memref<16x32xf32, #tpu.memory_space<vmem>>, vector<16x32xf32>
      %c0_10 = arith.constant 0 : index
      %c0_11 = arith.constant 0 : index
      %11 = vector.load %arg3[%c0_10, %c0_11] : memref<1x32xf32, #tpu.memory_space<vmem>>, vector<1x32xf32>
      %c0_12 = arith.constant 0 : index
      %c0_13 = arith.constant 0 : index
      %12 = vector.load %arg4[%c0_12, %c0_13] : memref<1x32xf32, #tpu.memory_space<vmem>>, vector<1x32xf32>
      %cst_14 = arith.constant dense<0.000000e+00> : vector<16xf32>
      %13 = vector.multi_reduction <add>, %10, %cst_14 [1] : vector<16x32xf32> to vector<16xf32>
      %14 = vector.shape_cast %13 : vector<16xf32> to vector<16x1xf32>
      %cst_15 = arith.constant 3.200000e+01 : f32
      %15 = vector.broadcast %cst_15 : f32 to vector<16x1xf32>
      %16 = arith.divf %14, %15 : vector<16x1xf32>
      %17 = vector.broadcast %16 : vector<16x1xf32> to vector<16x32xf32>
      %18 = arith.subf %10, %17 : vector<16x32xf32>
      %19 = arith.mulf %18, %18 : vector<16x32xf32>
      %cst_16 = arith.constant dense<0.000000e+00> : vector<16xf32>
      %20 = vector.multi_reduction <add>, %19, %cst_16 [1] : vector<16x32xf32> to vector<16xf32>
      %21 = vector.shape_cast %20 : vector<16xf32> to vector<16x1xf32>
      %cst_17 = arith.constant 3.200000e+01 : f32
      %22 = vector.broadcast %cst_17 : f32 to vector<16x1xf32>
      %23 = arith.divf %21, %22 : vector<16x1xf32>
      %cst_18 = arith.constant 9.99999974E-6 : f32
      %24 = vector.broadcast %cst_18 : f32 to vector<16x1xf32>
      %25 = arith.addf %23, %24 : vector<16x1xf32>
      %26 = math.rsqrt %25 : vector<16x1xf32>
      %27 = vector.broadcast %26 : vector<16x1xf32> to vector<16x32xf32>
      %28 = vector.broadcast %11 : vector<1x32xf32> to vector<16x32xf32>
      %29 = arith.mulf %27, %28 : vector<16x32xf32>
      %30 = arith.mulf %18, %29 : vector<16x32xf32>
      %31 = vector.broadcast %12 : vector<1x32xf32> to vector<16x32xf32>
      %32 = arith.addf %30, %31 : vector<16x32xf32>
      %c0_19 = arith.constant 0 : index
      %c0_20 = arith.constant 0 : index
      %33 = vector.load %arg8[%c0_19, %c0_20] : memref<16x32xf32, #tpu.memory_space<vmem>>, vector<16x32xf32>
      tpu.vector_store %arg8[%c0_19, %c0_20], %32 {strides = array<i32>} : memref<16x32xf32, #tpu.memory_space<vmem>>, vector<16x32xf32>,
    } else {
    }
    %c0 = arith.constant 0 : index
    %c0_1 = arith.constant 0 : index
    %3 = vector.load %arg8[%c0, %c0_1] : memref<16x32xf32, #tpu.memory_space<vmem>>, vector<16x32xf32>
    %c0_2 = arith.constant 0 : index
    %c0_3 = arith.constant 0 : index
    %4 = vector.load %arg5[%c0_2, %c0_3] : memref<32x128xf32, #tpu.memory_space<vmem>>, vector<32x128xf32>
    %cst = arith.constant dense<0.000000e+00> : vector<16x128xf32>
    %5 = tpu.matmul %3, %4, %cst {dimension_numbers = #tpu.dot_dimension_numbers<[1], [0], [0], [1], [0, 0, 1, 1], [], []>} : vector<16x32xf32>, vector<32x128xf32>, vector<16x128xf32> -> vector<16x128xf32>
    %c0_4 = arith.constant 0 : index
    %c0_5 = arith.constant 0 : index
    %6 = vector.load %arg6[%c0_4, %c0_5] : memref<1x128xf32, #tpu.memory_space<vmem>>, vector<1x128xf32>
    %7 = vector.broadcast %6 : vector<1x128xf32> to vector<16x128xf32>
    %8 = arith.addf %5, %7 : vector<16x128xf32>
    %c0_6 = arith.constant 0 : index
    %c0_7 = arith.constant 0 : index
    %9 = vector.load %arg7[%c0_6, %c0_7] : memref<16x128xf32, #tpu.memory_space<vmem>>, vector<16x128xf32>
    tpu.vector_store %arg7[%c0_6, %c0_7], %8 {strides = array<i32>} : memref<16x128xf32, #tpu.memory_space<vmem>>, vector<16x128xf32>,
    return
  }
  func.func @transform_0(%arg0: i32, %arg1: i32) -> (i32, i32) {
    %c0_i32 = arith.constant 0 : i32
    %c0_i32_0 = arith.constant 0 : i32
    return %arg0, %c0_i32 : i32, i32
  }
  func.func @transform_1(%arg0: i32, %arg1: i32) -> (i32, i32) {
    %c0_i32 = arith.constant 0 : i32
    %c0_i32_0 = arith.constant 0 : i32
    %c0_i32_1 = arith.constant 0 : i32
    return %c0_i32, %c0_i32_0 : i32, i32
  }
  func.func @transform_2(%arg0: i32, %arg1: i32) -> (i32, i32) {
    %c0_i32 = arith.constant 0 : i32
    %c0_i32_0 = arith.constant 0 : i32
    %c0_i32_1 = arith.constant 0 : i32
    return %c0_i32, %c0_i32_0 : i32, i32
  }
  func.func @transform_3(%arg0: i32, %arg1: i32) -> (i32, i32) {
    %c0_i32 = arith.constant 0 : i32
    %c0_i32_0 = arith.constant 0 : i32
    return %c0_i32, %arg1 : i32, i32
  }
  func.func @transform_4(%arg0: i32, %arg1: i32) -> (i32, i32) {
    %c0_i32 = arith.constant 0 : i32
    %c0_i32_0 = arith.constant 0 : i32
    return %c0_i32, %arg1 : i32, i32
  }
  func.func @transform_5(%arg0: i32, %arg1: i32) -> (i32, i32) {
    %c0_i32 = arith.constant 0 : i32
    return %arg0, %arg1 : i32, i32
  }
}

</mosaic_0001>

<llo_original>
// kernel: tpu_custom_call.1
$region0: #{tpu_custom_call.1}
  #allocation0 [shape = 'u32[]', space=smem, size = 0x4, offset = 0x4, fixed_abs, tag = 'smem constant byte address 0x4 - core index']
  #allocation1 [shape = 'u32[144,128]{1,0:T(1,128)}', space=vmem, size = 0x12000, scoped, tag = 'internal scratch']
  #allocation2 [shape = 'f32[16,32]{1,0:T(8,128)}', space=vmem, size = 0x2000, scoped, tag = 'scratch operand']
  %s0 = inlined_call_operand.hbm [shape: f32[16,32], index: 0, kind: input, shape index: {}]
  %s1 = inlined_call_operand.vmem [shape: f32[1,32], index: 1, kind: input, shape index: {}]
  %s2 = inlined_call_operand.vmem [shape: f32[1,32], index: 2, kind: input, shape index: {}]
  %s3 = inlined_call_operand.hbm [shape: f32[32,128], index: 3, kind: input, shape index: {}]
  %s4 = inlined_call_operand.vmem [shape: f32[1,128], index: 4, kind: input, shape index: {}]
  %s5 = inlined_call_operand.hbm [shape: f32[16,128], index: 5, kind: output, shape index: {}]
  %s6 = sld [smem:[#allocation0]]
  $region42: #{tpu_custom_call.1} parent=0
    _
  %s8 = ssub.s32 1, %s6
  %s9 = scalar_select 0, %s8, %s6
  $region1: #{tpu_custom_call.1} parent=0
    #allocation3 [shape = 'u8[8192]{0}', space=vmem, size = 0x2000, scoped, tag = 'input window, operand 0, single buffered']
    #allocation4 [shape = 's32[1]{0}', space=sflag, size = 0x4, scoped, tag = 'scoped memory for tpu_custom_call.1']
    #allocation5 [shape = 's32[1]{0}', space=sflag, size = 0x4, scoped, tag = 'scoped memory for tpu_custom_call.1']
    #allocation6 [shape = 'u8[16384]{0}', space=vmem, size = 0x4000, scoped, tag = 'input window, operand 3, single buffered']
    #allocation7 [shape = 's32[1]{0}', space=sflag, size = 0x4, scoped, tag = 'scoped memory for tpu_custom_call.1']
    #allocation8 [shape = 'u8[8192]{0}', space=vmem, size = 0x2000, scoped, tag = 'output window, operand 0, single buffered']
    %10 = vsyncpa [#allocation4], 0
    %11 = vsyncpa [#allocation7], 0
    %12 = vsyncpa [#allocation5], 0
    // Predicated region
    $region2: #{tpu_custom_call.1} parent=1 // pred_check
      _
    $region3: #{tpu_custom_call.1} parent=1 // pred_check_branch
      %14 = sbr.rel (0) target = $region5
    $region4: #{tpu_custom_call.1} parent=1 // pred_region
      %s16 = ssub.s32 256, 256
      %17 = vsyncadd [#allocation4], %s16
      %s18 = sshll.u32 [#allocation3], 4
      %s19 = int_to_ptr.vmem [resolvable:$true] %s18
      %24 = dma.hbm_to_vmem [thread:$0]  %s0, 256, %s19, [#allocation4], 128, 128, 8
    $region5: #{tpu_custom_call.1} parent=1 // pred_fallthru
      _
    // Predicated region
    $region6: #{tpu_custom_call.1} parent=1 // pred_check
      _
    $region7: #{tpu_custom_call.1} parent=1 // pred_check_branch
      %26 = sbr.rel (0) target = $region9
    $region8: #{tpu_custom_call.1} parent=1 // pred_region
      _
    $region9: #{tpu_custom_call.1} parent=1 // pred_fallthru
      _
    // Predicated region
    $region10: #{tpu_custom_call.1} parent=1 // pred_check
      _
    $region11: #{tpu_custom_call.1} parent=1 // pred_check_branch
      %28 = sbr.rel (0) target = $region13
    $region12: #{tpu_custom_call.1} parent=1 // pred_region
      _
    $region13: #{tpu_custom_call.1} parent=1 // pred_fallthru
      _
    // Predicated region
    $region14: #{tpu_custom_call.1} parent=1 // pred_check
      _
    $region15: #{tpu_custom_call.1} parent=1 // pred_check_branch
      %30 = sbr.rel (0) target = $region17
    $region16: #{tpu_custom_call.1} parent=1 // pred_region
      %s32 = ssub.s32 512, 512
      %33 = vsyncadd [#allocation7], %s32
      %s34 = sshll.u32 [#allocation6], 4
      %s35 = int_to_ptr.vmem [resolvable:$true] %s34
      %40 = dma.hbm_to_vmem [thread:$0]  %s3, 512, %s35, [#allocation7], 128, 128, 8
    $region17: #{tpu_custom_call.1} parent=1 // pred_fallthru
      _
    // Predicated region
    $region18: #{tpu_custom_call.1} parent=1 // pred_check
      _
    $region19: #{tpu_custom_call.1} parent=1 // pred_check_branch
      %42 = sbr.rel (0) target = $region21
    $region20: #{tpu_custom_call.1} parent=1 // pred_region
      _
    $region21: #{tpu_custom_call.1} parent=1 // pred_fallthru
      _
    // Predicated region
    $region22: #{tpu_custom_call.1} parent=1 // pred_check
      _
    $region23: #{tpu_custom_call.1} parent=1 // pred_check_branch
      %44 = sbr.rel (0) target = $region25
    $region24: #{tpu_custom_call.1} parent=1 // pred_region
      %45 = dma.done [#allocation4], 256
    $region25: #{tpu_custom_call.1} parent=1 // pred_fallthru
      _
    // Predicated region
    $region26: #{tpu_custom_call.1} parent=1 // pred_check
      _
    $region27: #{tpu_custom_call.1} parent=1 // pred_check_branch
      %47 = sbr.rel (0) target = $region29
    $region28: #{tpu_custom_call.1} parent=1 // pred_region
      %48 = dma.done [#allocation7], 512
    $region29: #{tpu_custom_call.1} parent=1 // pred_fallthru
      _
    %p49 = scmp.eq.s32.totalorder 0, 0
    // Predicated region
    $region30: #{tpu_custom_call.1} parent=1 // pred_check
      %p50 = pneg %p49
    $region31: #{tpu_custom_call.1} parent=1 // pred_check_branch
      %52 = sbr.rel (%p50) target = $region33
    $region32: #{tpu_custom_call.1} parent=1 // pred_region
      %v53 = vld [vmem:[#allocation3] sm:$0xff]
      %v54 = vld [vmem:[#allocation3 + $0x8] sm:$0xff]
      %v55 = vld [vmem:[%s1] sm:$0x1]
      %v56 = vld [vmem:[%s2] sm:$0x1]
      %vm57 = vcmask 261120
      %v58 = vsel %vm57, %v53, 0.0
      %59 = vadd.xlane.f32.xlu0 %v58
      %v60 = vpop.xlane.xlu0 %59
      %v61 = vsel %vm57, %v54, 0.0
      %62 = vadd.xlane.f32.xlu0 %v61
      %v63 = vpop.xlane.xlu0 %62
      %v64 = vrcp.pop 32.0
      %v65 = vmul.f32 %v60, %v64
      %v66 = vmul.f32 %v63, %v64
      %v67 = vsub.f32 %v53, %v65
      %v68 = vsub.f32 %v54, %v66
      %v69 = vmul.f32 %v67, %v67
      %v70 = vmul.f32 %v68, %v68
      %v71 = vsel %vm57, %v69, 0.0
      %72 = vadd.xlane.f32.xlu0 %v71
      %v73 = vpop.xlane.xlu0 %72
      %v74 = vsel %vm57, %v70, 0.0
      %75 = vadd.xlane.f32.xlu0 %v74
      %v76 = vpop.xlane.xlu0 %75
      %v77 = vmul.f32 %v73, %v64
      %v78 = vmul.f32 %v76, %v64
      %v79 = vadd.f32 %v77, 1e-05
      %v80 = vadd.f32 %v78, 1e-05
      %v81 = vrsqrt.pop %v79
      %v82 = vrsqrt.pop %v80
      %v84 = vlaneseq
      %v85 = vshrl.u32 %v84, 7
      %v86 = vsub.s32 0, %v85
      %v87 = vrot.slane %v55, %v86
      %v89 = vmul.f32 %v81, %v87
      %v90 = vmul.f32 %v82, %v87
      %v91 = vmul.f32 %v67, %v89
      %v92 = vmul.f32 %v68, %v90
      %v94 = vlaneseq
      %v95 = vshrl.u32 %v94, 7
      %v96 = vsub.s32 0, %v95
      %v97 = vrot.slane %v56, %v96
      %v99 = vadd.f32 %v91, %v97
      %v100 = vadd.f32 %v92, %v97
      %101 = vst.msk [vmem:[#allocation2] sm:$0xff] %vm57, %v99
      %102 = vst.msk [vmem:[#allocation2 + $0x8] sm:$0xff] %vm57, %v100
    $region33: #{tpu_custom_call.1} parent=1 // pred_fallthru
      _
    %v103 = vld [vmem:[#allocation2] sm:$0xff]
    %v104 = vld [vmem:[#allocation2 + $0x8] sm:$0xff]
    %v105 = vld [vmem:[#allocation6] sm:$0xff]
    %v106 = vld [vmem:[#allocation6 + $0x8] sm:$0xff]
    %v107 = vld [vmem:[#allocation6 + $0x10] sm:$0xff]
    %v108 = vld [vmem:[#allocation6 + $0x18] sm:$0xff]
    %v109 = vld [vmem:[%s4] sm:$0x1]
    %v111 = vlaneseq
    %v112 = vshrl.u32 %v111, 7
    %v113 = vsub.s32 0, %v112
    %v114 = vrot.slane %v109, %v113
    %vm116 = vcmask 261120
    %v118 = vsel %vm116, %v103, 0
    %v121 = vsel %vm116, %v104, 0
    %123 = vmatprep.subr.mxu0 0.0
    %124 = vmatpush1.msra.mxu0 0.0
    %125 = vmatprep.subr.mxu0 0.0
    %126 = vmatpush1.msra.mxu0 0.0
    %127 = vmatprep.subr.mxu0 0.0
    %128 = vmatpush1.msra.mxu0 0.0
    %129 = vmatprep.subr.mxu0 0.0
    %130 = vmatpush1.msra.mxu0 0.0
    %131 = vmatprep.subr.mxu0 0.0
    %132 = vmatpush1.msra.mxu0 0.0
    %133 = vmatprep.subr.mxu0 0.0
    %134 = vmatpush1.msra.mxu0 0.0
    %135 = vmatprep.subr.mxu0 0.0
    %136 = vmatpush1.msra.mxu0 0.0
    %137 = vmatprep.subr.mxu0 0.0
    %138 = vmatpush1.msra.mxu0 0.0
    %139 = vmatprep.subr.mxu0 0.0
    %140 = vmatpush1.msra.mxu0 0.0
    %141 = vmatprep.subr.mxu0 0.0
    %142 = vmatpush1.msra.mxu0 0.0
    %143 = vmatprep.subr.mxu0 0.0
    %144 = vmatpush1.msra.mxu0 0.0
    %145 = vmatprep.subr.mxu0 0.0
    %146 = vmatpush1.msra.mxu0 0.0
    %147 = vmatprep.subr.mxu0 0.0
    %148 = vmatpush1.msra.mxu0 %v108
    %149 = vmatprep.subr.mxu0 0.0
    %150 = vmatpush1.msra.mxu0 %v107
    %151 = vmatprep.subr.mxu0 0.0
    %152 = vmatpush1.msra.mxu0 %v106
    %153 = vmatprep.subr.mxu0 0.0
    %154 = vmatpush1.msra.mxu0 %v105
    %155 = vmatprep.subr.mxu0 0.0
    %156 = vmatpush2.msra.mxu0 0.0
    %157 = vmatprep.subr.mxu0 0.0
    %158 = vmatpush2.msra.mxu0 0.0
    %159 = vmatprep.subr.mxu0 0.0
    %160 = vmatpush2.msra.mxu0 0.0
    %161 = vmatprep.subr.mxu0 0.0
    %162 = vmatpush2.msra.mxu0 0.0
    %163 = vmatprep.subr.mxu0 0.0
    %164 = vmatpush2.msra.mxu0 0.0
    %165 = vmatprep.subr.mxu0 0.0
    %166 = vmatpush2.msra.mxu0 0.0
    %167 = vmatprep.subr.mxu0 0.0
    %168 = vmatpush2.msra.mxu0 0.0
    %169 = vmatprep.subr.mxu0 0.0
    %170 = vmatpush2.msra.mxu0 0.0
    %171 = vmatprep.subr.mxu0 0.0
    %172 = vmatpush2.msra.mxu0 0.0
    %173 = vmatprep.subr.mxu0 0.0
    %174 = vmatpush2.msra.mxu0 0.0
    %175 = vmatprep.subr.mxu0 0.0
    %176 = vmatpush2.msra.mxu0 0.0
    %177 = vmatprep.subr.mxu0 0.0
    %178 = vmatpush2.msra.mxu0 0.0
    %179 = vmatprep.subr.mxu0 0.0
    %180 = vmatpush2.msra.mxu0 0.0
    %181 = vmatprep.subr.mxu0 0.0
    %182 = vmatpush2.msra.mxu0 0.0
    %183 = vmatprep.subr.mxu0 0.0
    %184 = vmatpush2.msra.mxu0 0.0
    %185 = vmatprep.subr.mxu0 0.0
    %186 = vmatpush2.msra.mxu0 0.0
    %187 = vmatprep.mubr.f32.mxu0 0.0
    %188 = vmatmul.mubr.f32.gmra.mxu0 %v118
    %v189 = vpop.f32.mrf.mxu0
    %v190 = vadd.f32 %v114, %v189
    %v191 = vpop.f32.mrf.mxu0
    %192 = vmatprep.mubr.f32.mxu0 0.0
    %193 = vmatmul.mubr.f32.gmra.mxu0 %v121
    %v194 = vpop.f32.mrf.mxu0
    %v195 = vadd.f32 %v114, %v194
    %v196 = vpop.f32.mrf.mxu0
    %197 = vdwg.mxu0
    %198 = vst [vmem:[#allocation8] sm:$0xff] %v190
    %199 = vst [vmem:[#allocation8 + $0x8] sm:$0xff] %v195
    // Predicated region
    $region34: #{tpu_custom_call.1} parent=1 // pred_check
      _
    $region35: #{tpu_custom_call.1} parent=1 // pred_check_branch
      %201 = sbr.rel (0) target = $region37
    $region36: #{tpu_custom_call.1} parent=1 // pred_region
      %s203 = ssub.s32 256, 256
      %204 = vsyncadd [#allocation5], %s203
      %s205 = sshll.u32 [#allocation8], 4
      %s206 = int_to_ptr.vmem [resolvable:$true] %s205
      %211 = dma.vmem_to_hbm [thread:$0]  %s206, 256, %s5, [#allocation5], 128, 128, 8
    $region37: #{tpu_custom_call.1} parent=1 // pred_fallthru
      _
    // Predicated region
    $region38: #{tpu_custom_call.1} parent=1 // pred_check
      _
    $region39: #{tpu_custom_call.1} parent=1 // pred_check_branch
      %213 = sbr.rel (0) target = $region41
    $region40: #{tpu_custom_call.1} parent=1 // pred_region
      %214 = dma.done [#allocation5], 256
    $region41: #{tpu_custom_call.1} parent=1 // pred_fallthru
      _
    %215 = vsyncpa [#allocation4], 1
    %216 = vsyncpa [#allocation7], 1
    %217 = vsyncpa [#allocation5], 1

</llo_original>
